<compile_context>
chip_gen: v7x
topology: tpu7x:2x2x1
jax: 0.10.0
libtpu: 0.0.40
codegen_flags: <defaults>
</compile_context>

<pallas_src>
import jax
import jax.numpy as jnp
from jax.experimental import pallas as pl
from jax.experimental.pallas import tpu as pltpu


def _exp_kernel(log_temp_ref, out_ref):
    # Single elementwise exp on a (1, 1) VMEM tile -> one EUP transcendental.
    out_ref[...] = jnp.exp(log_temp_ref[...])


# Built once at import time; no grid, whole-array VMEM blocks, advisory cost.
_exp_pallas = pl.pallas_call(
    _exp_kernel,
    out_shape=jax.ShapeDtypeStruct((1, 1), jnp.float32),
    in_specs=[pl.BlockSpec(memory_space=pltpu.VMEM)],
    out_specs=pl.BlockSpec(memory_space=pltpu.VMEM),
    cost_estimate=pl.CostEstimate(flops=0, transcendentals=1, bytes_accessed=8),
)


@jax.jit
def temperature_holder_forward(log_temperature_2d: jax.Array) -> jax.Array:
    """Pallas equivalent of TemperatureHolder.forward().

    Args:
      log_temperature_2d: (1, 1) float32 array (the learnable parameter, kept
        permanently in its TPU-friendly layout so no per-call reshape or dtype
        cast is emitted on the input side).

    Returns:
      0-dim float32 array = exp(log_temperature), matching torch.exp of a
      0-dim tensor.
    """
    out_2d = _exp_pallas(log_temperature_2d)
    # Single cheap reshape back to 0-dim to preserve the PyTorch return shape;
    # fused into the same jitted executable as the pallas_call.
    return jnp.reshape(out_2d, ())


def temperature_inline(log_temperature: jax.Array) -> jax.Array:
    """Recommended production path: no Pallas dispatch, fuses into consumers."""
    return jnp.exp(log_temperature.astype(jnp.float32))


# NOTE (consumer-kernel fusion): if the temperature is consumed inside another
# Pallas kernel (e.g. an alpha/entropy-loss kernel), do NOT call this kernel;
# instead pass `log_temperature` as an SMEM scalar
# (pl.BlockSpec((1, 1), memory_space=pltpu.SMEM)) or a scalar-prefetch arg and
# compute jnp.exp on it inside that kernel — the extra EUP op is free there.


class TemperatureHolder:
    """JAX/Pallas port of the PyTorch TemperatureHolder module."""

    def __init__(self, initial_log_temperature: float = 0.0):
        self.initial_log_temperature_value = float(initial_log_temperature)
        # Parameter stored permanently as (1, 1) float32 (sublane/lane layout)
        # so the forward pass emits no convert/reshape ops on the input side.
        self.log_temperature = jnp.full(
            (1, 1), self.initial_log_temperature_value, dtype=jnp.float32
        )

    def __call__(self) -> jax.Array:
        return temperature_holder_forward(self.log_temperature)

    def reset_parameters(self):
        self.log_temperature = jnp.full(
            (1, 1), self.initial_log_temperature_value, dtype=jnp.float32
        )


if __name__ == "__main__":
    # The forward pass takes no inputs; use PRNGKey(0) to pick a deterministic
    # initial_log_temperature for the example.
    key = jax.random.PRNGKey(0)
    initial_log_temperature = float(jax.random.normal(key, ()) * 0.1)

    holder = TemperatureHolder(initial_log_temperature=initial_log_temperature)
    temperature = holder()
    temperature = jax.block_until_ready(temperature)

    # Correctness check against the pure-JAX reference.
    expected = jnp.exp(jnp.asarray(initial_log_temperature, dtype=jnp.float32))
    assert temperature.shape == ()
    assert temperature.dtype == jnp.float32
    assert jnp.allclose(temperature, expected, rtol=1e-6, atol=1e-6)

    # The recommended (fusable) path must agree too.
    inline = jax.block_until_ready(
        temperature_inline(jnp.reshape(holder.log_temperature, ()))
    )
    assert jnp.allclose(inline, expected, rtol=1e-6, atol=1e-6)

    # Exercise reset_parameters for parity with the PyTorch module.
    holder.reset_parameters()
    temperature2 = jax.block_until_ready(holder())
    assert jnp.allclose(temperature2, expected, rtol=1e-6, atol=1e-6)

    print("KERNEL_OK")
</pallas_src>

<mosaic_0001>
module attributes {stable_mosaic.version = 11 : i64} {
  func.func @_exp_kernel(%arg0: memref<1x1xf32, #tpu.memory_space<vmem>>, %arg1: memref<1x1xf32, #tpu.memory_space<vmem>>) attributes {dimension_semantics = [], scalar_prefetch = 0 : i64, scratch_operands = 0 : i64, tpu.core_type = #tpu.core_type<tc>} {
    %c0 = arith.constant 0 : index
    %c0_0 = arith.constant 0 : index
    %0 = vector.load %arg0[%c0, %c0_0] : memref<1x1xf32, #tpu.memory_space<vmem>>, vector<1x1xf32>
    %1 = math.exp %0 : vector<1x1xf32>
    %c0_1 = arith.constant 0 : index
    %c0_2 = arith.constant 0 : index
    %2 = vector.load %arg1[%c0_1, %c0_2] : memref<1x1xf32, #tpu.memory_space<vmem>>, vector<1x1xf32>
    tpu.vector_store %arg1[%c0_1, %c0_2], %1 {strides = array<i32>} : memref<1x1xf32, #tpu.memory_space<vmem>>, vector<1x1xf32>,
    return
  }
}

</mosaic_0001>

<llo_original>
// kernel: temperature_holder_forward.1
$region0: #{temperature_holder_forward.1}
  #allocation0 [shape = 'u32[]', space=smem, size = 0x4, offset = 0x4, fixed_abs, tag = 'smem constant byte address 0x4 - core index']
  #allocation1 [shape = 'u32[144,128]{1,0:T(1,128)}', space=vmem, size = 0x12000, scoped, tag = 'internal scratch']
  #allocation2 [shape = 'f32[1,1]{1,0:T(1,128)S(1)}', space=vmem, size = 0x200, scoped, tag = 'scoped memory for temperature_holder_forward.1']
  %s0 = inlined_call_operand.<no memory space> [shape: f32[1,1], index: 0, kind: input, shape index: {}]
  %s1 = inlined_call_operand.hbm [shape: f32[1,1], index: 1, kind: output, shape index: {}]
  %s2 = sld [smem:[#allocation0]]
  $region14: #{temperature_holder_forward.1} parent=0
    _
  %s4 = ssub.s32 1, %s2
  %s5 = scalar_select 0, %s4, %s2
  %v6 = vstv %s0
  %7 = vst [vmem:[#allocation2] sm:$0x1] %v6
  $region1: #{temperature_holder_forward.1} parent=0
    #allocation3 [shape = 'u8[512]{0}', space=vmem, size = 0x400, scoped, tag = 'output window, operand 0, single buffered']
    #allocation4 [shape = 's32[1]{0}', space=sflag, size = 0x4, scoped, tag = 'scoped memory for temperature_holder_forward.1']
    %8 = vsyncpa [#allocation4], 0
    // Predicated region
    $region2: #{temperature_holder_forward.1} parent=1 // pred_check
      _
    $region3: #{temperature_holder_forward.1} parent=1 // pred_check_branch
      %10 = sbr.rel (0) target = $region5
    $region4: #{temperature_holder_forward.1} parent=1 // pred_region
      _
    $region5: #{temperature_holder_forward.1} parent=1 // pred_fallthru
      _
    %v11 = vld [vmem:[#allocation2] sm:$0x1]
    %v12 = vmul.f32 %v11, 1.442695
    %v13 = vpow.pop %v12
    %vm14 = vcmask 0
    %15 = vst.msk [vmem:[#allocation3] sm:$0x1] %vm14, %v13
    // Predicated region
    $region6: #{temperature_holder_forward.1} parent=1 // pred_check
      _
    $region7: #{temperature_holder_forward.1} parent=1 // pred_check_branch
      %17 = sbr.rel (0) target = $region9
    $region8: #{temperature_holder_forward.1} parent=1 // pred_region
      %s19 = ssub.s32 16, 16
      %20 = vsyncadd [#allocation4], %s19
      %s22 = sshll.u32 [#allocation3], 4
      %s23 = int_to_ptr.vmem [resolvable:$true] %s22
      %25 = dma.vmem_to_hbm [thread:$0]  %s23, 16, %s1, [#allocation4]
    $region9: #{temperature_holder_forward.1} parent=1 // pred_fallthru
      _
    // Predicated region
    $region10: #{temperature_holder_forward.1} parent=1 // pred_check
      _
    $region11: #{temperature_holder_forward.1} parent=1 // pred_check_branch
      %27 = sbr.rel (0) target = $region13
    $region12: #{temperature_holder_forward.1} parent=1 // pred_region
      %28 = dma.done [#allocation4], 16
    $region13: #{temperature_holder_forward.1} parent=1 // pred_fallthru
      _
    %29 = vsyncpa [#allocation4], 1

</llo_original>
